<compile_context>
chip_gen: v7x
topology: tpu7x:2x2x1
jax: 0.10.0
libtpu: 0.0.40
codegen_flags: <defaults>
</compile_context>

<pallas_src>
import math

import jax
import jax.numpy as jnp
from jax.experimental import pallas as pl

# ----------------------------- configuration --------------------------------
B, E, S = 2, 4, 8          # batch, max_num_episodes, max_episode_length
D_IN = 16                  # input_dim
PRE_HIDDEN = (32, 32)      # pre_hidden_dims  -> agg_dim = 32
POST_HIDDEN = (32,)        # post_hidden_dims
D_OUT = 16                 # output_dim

H1, H2 = PRE_HIDDEN        # H2 == agg_dim
P1 = POST_HIDDEN[0]
LANE = 128                 # lane width; output padded to this for dense stores


def _rpad8(n):
    return (n + 7) // 8 * 8


# row offsets of the packed weight slab (sublane aligned)
R1 = _rpad8(D_IN)          # start of w2
R2 = R1 + _rpad8(H1)       # start of w3
R3 = R2 + _rpad8(H2)       # start of w4
R_TOTAL = R3 + _rpad8(P1)  # total rows of the weight slab


# ------------------------------- kernel -------------------------------------
def _encoder_kernel(x_ref, wsel_ref, wp_ref, bp_ref, o_ref):
    f32, bf16 = jnp.float32, jnp.bfloat16

    # ---- pre_agg_mlp: Linear-ReLU-Linear-ReLU (bf16 operands, f32 accum) ----
    h = jnp.dot(x_ref[...], wp_ref[0:D_IN, 0:H1],
                preferred_element_type=f32) + bp_ref[0:1, 0:H1]
    h = jnp.maximum(h, 0.0)
    h = jnp.dot(h.astype(bf16), wp_ref[R1:R1 + H1, 0:H2],
                preferred_element_type=f32) + bp_ref[1:2, 0:H2]
    h = jnp.maximum(h, 0.0)                                   # (B*E*S, H2) f32

    # ---- both masked means collapsed into one pre-normalised matmul --------
    # wsel is the block-diagonal matrix diag(1/den_ep) @ ep_sel @ diag(1/den_sp) @ sp_sel
    x_p = jnp.dot(wsel_ref[...], h.astype(bf16),
                  preferred_element_type=f32)                 # (8, H2) f32

    # ---- post_agg_mlp: Linear-ReLU-Linear -----------------------------------
    y = jnp.dot(x_p.astype(bf16), wp_ref[R2:R2 + H2, 0:P1],
                preferred_element_type=f32) + bp_ref[2:3, 0:P1]
    y = jnp.maximum(y, 0.0)
    o_ref[...] = jnp.dot(y.astype(bf16), wp_ref[R3:R3 + P1, :],
                         preferred_element_type=f32) + bp_ref[3:4, :]


# ------------------------------- wrapper -------------------------------------
def aggregated_mlp_encoder(x, ep_mask, sp_mask, params):
    B_, E_, S_, D = x.shape
    assert D == D_IN
    f32, bf16 = jnp.float32, jnp.bfloat16
    w1, b1, w2, b2, w3, b3, w4, b4 = params

    # flatten activations; matmul operands in bf16
    x2 = x.reshape(B_ * E_ * S_, D).astype(bf16)

    # combined, pre-normalised block-diagonal selection matrix:
    # W[b, (b',e,s)] = [b==b'] * keep_ep[b,e]/den_ep[b] * keep_sp[b,e,s]/den_sp[b,e]
    sp_keep = 1.0 - sp_mask.astype(f32)                           # (B,E,S)
    ep_keep = 1.0 - ep_mask.astype(f32)                           # (B,E)
    den_sp = jnp.maximum(sp_keep.sum(-1, keepdims=True), 1.0)     # (B,E,1)
    den_ep = jnp.maximum(ep_keep.sum(-1, keepdims=True), 1.0)     # (B,1)
    w_comb = (sp_keep / den_sp) * (ep_keep / den_ep)[..., None]   # (B,E,S)
    Wb = w_comb.reshape(B_, E_ * S_)
    W = (jnp.eye(B_, dtype=f32)[:, :, None] * Wb[None]).reshape(B_, B_ * E_ * S_)
    rows_out = _rpad8(B_)                       # pad rows -> sublane-aligned output
    W = jnp.pad(W, ((0, rows_out - B_), (0, 0))).astype(bf16)

    # pack the four weight matrices into one bf16 slab (lane-padded to 128,
    # row-padded to multiples of 8 so in-kernel slices stay sublane aligned)
    def pad_w(w):
        return jnp.pad(w, ((0, -w.shape[0] % 8), (0, LANE - w.shape[1])))

    w_pack = jnp.concatenate(
        [pad_w(w1), pad_w(w2), pad_w(w3), pad_w(w4)], axis=0).astype(bf16)
    assert w_pack.shape == (R_TOTAL, LANE), w_pack.shape

    # pack the four biases into one f32 slab (one lane-padded row each)
    def pad_b(b):
        return jnp.pad(b, ((0, 0), (0, LANE - b.shape[1])))

    b_pack = jnp.concatenate(
        [pad_b(b1), pad_b(b2), pad_b(b3), pad_b(b4)], axis=0).astype(f32)

    args = (x2, W, w_pack, b_pack)

    def full_spec(shape):
        return pl.BlockSpec(shape, lambda i, _n=len(shape): (0,) * _n)

    out = pl.pallas_call(
        _encoder_kernel,
        grid=(1,),
        in_specs=[full_spec(a.shape) for a in args],
        out_specs=full_spec((rows_out, LANE)),
        out_shape=jax.ShapeDtypeStruct((rows_out, LANE), f32),
    )(*args)
    return out[:B_, :D_OUT]


# --------------------------- pure-JAX reference ------------------------------
def reference(x, ep_mask, sp_mask, params):
    """Pure-JAX reference with the same mixed-precision discipline as the
    kernel (bf16 matmul operands, f32 accumulation / elementwise)."""
    w1, b1, w2, b2, w3, b3, w4, b4 = params
    f32, bf16 = jnp.float32, jnp.bfloat16

    def mm(a, b):
        return jnp.dot(a.astype(bf16), b.astype(bf16), preferred_element_type=f32)

    h = jnp.maximum(mm(x, w1) + b1[0], 0.0)
    h = jnp.maximum(mm(h, w2) + b2[0], 0.0)                       # (B,E,S,H2)
    sp_w = 1.0 - sp_mask.astype(f32)
    x_ep = (h * sp_w[..., None]).sum(-2) / jnp.maximum(
        sp_w.sum(-1, keepdims=True), 1.0)                         # (B,E,H2)
    ep_w = 1.0 - ep_mask.astype(f32)
    x_p = (x_ep * ep_w[..., None]).sum(-2) / jnp.maximum(
        ep_w.sum(-1, keepdims=True), 1.0)                         # (B,H2)
    y = jnp.maximum(mm(x_p, w3) + b3[0], 0.0)
    return mm(y, w4) + b4[0]


# --------------------------------- main --------------------------------------
if __name__ == "__main__":
    key = jax.random.PRNGKey(0)
    keys = jax.random.split(key, 8)

    x = jax.random.normal(keys[0], (B, E, S, D_IN), jnp.float32)
    sp_mask = jax.random.bernoulli(keys[1], 0.3, (B, E, S))
    sp_mask = sp_mask.at[0, E - 1].set(True)                 # one fully padded episode
    ep_mask = jax.random.bernoulli(keys[2], 0.2, (B, E))

    # deterministic param init (module uses orthogonal w/ relu gain, zero bias;
    # here: scaled normal weights, zero bias — synthetic weights, not a checkpoint)
    gain = math.sqrt(2.0)

    def lin(k, din, dout):
        w = gain * jax.random.normal(k, (din, dout), jnp.float32) / jnp.sqrt(float(din))
        b = jnp.zeros((1, dout), jnp.float32)
        return w, b

    w1, b1 = lin(keys[3], D_IN, H1)
    w2, b2 = lin(keys[4], H1, H2)
    w3, b3 = lin(keys[5], H2, P1)
    w4, b4 = lin(keys[6], P1, D_OUT)
    params = (w1, b1, w2, b2, w3, b3, w4, b4)

    out = aggregated_mlp_encoder(x, ep_mask, sp_mask, params)
    jax.block_until_ready(out)

    ref = reference(x, ep_mask, sp_mask, params)
    assert out.shape == (B, D_OUT), out.shape
    # bf16 matmul operands => loosened tolerance (per review note)
    assert jnp.allclose(out, ref, rtol=5e-2, atol=5e-2), (out, ref)
    print("KERNEL_OK")
</pallas_src>

<mosaic_0001>
module attributes {stable_mosaic.version = 11 : i64} {
  func.func @_encoder_kernel(%arg0: i32, %arg1: memref<64x16xbf16, #tpu.memory_space<vmem>>, %arg2: memref<8x64xbf16, #tpu.memory_space<vmem>>, %arg3: memref<112x128xbf16, #tpu.memory_space<vmem>>, %arg4: memref<4x128xf32, #tpu.memory_space<vmem>>, %arg5: memref<8x128xf32, #tpu.memory_space<vmem>>) attributes {dimension_semantics = [#tpu.dimension_semantics<arbitrary>], iteration_bounds = array<i64: 1>, scalar_prefetch = 0 : i64, scratch_operands = 0 : i64, tpu.core_type = #tpu.core_type<tc>, window_params = [{pipeline_mode = #tpu.pipeline_mode<synchronous>, transform_indices = @transform_0, window_bounds = array<i64: 64, 16>}, {pipeline_mode = #tpu.pipeline_mode<synchronous>, transform_indices = @transform_1, window_bounds = array<i64: 8, 64>}, {pipeline_mode = #tpu.pipeline_mode<synchronous>, transform_indices = @transform_2, window_bounds = array<i64: 112, 128>}, {pipeline_mode = #tpu.pipeline_mode<synchronous>, transform_indices = @transform_3, window_bounds = array<i64: 4, 128>}, {pipeline_mode = #tpu.pipeline_mode<synchronous>, transform_indices = @transform_4, window_bounds = array<i64: 8, 128>}]} {
    %c0 = arith.constant 0 : index
    %c0_0 = arith.constant 0 : index
    %0 = vector.load %arg1[%c0, %c0_0] : memref<64x16xbf16, #tpu.memory_space<vmem>>, vector<64x16xbf16>
    %c0_1 = arith.constant 0 : index
    %c0_2 = arith.constant 0 : index
    %1 = vector.load %arg3[%c0_1, %c0_2] : memref<112x128xbf16, #tpu.memory_space<vmem>>, vector<16x32xbf16>
    %cst = arith.constant dense<0.000000e+00> : vector<64x32xf32>
    %2 = tpu.matmul %0, %1, %cst {dimension_numbers = #tpu.dot_dimension_numbers<[1], [0], [0], [1], [0, 0, 1, 1], [], []>} : vector<64x16xbf16>, vector<16x32xbf16>, vector<64x32xf32> -> vector<64x32xf32>
    %c0_3 = arith.constant 0 : index
    %c0_4 = arith.constant 0 : index
    %3 = vector.load %arg4[%c0_3, %c0_4] : memref<4x128xf32, #tpu.memory_space<vmem>>, vector<1x32xf32>
    %4 = vector.broadcast %3 : vector<1x32xf32> to vector<64x32xf32>
    %5 = arith.addf %2, %4 : vector<64x32xf32>
    %cst_5 = arith.constant 0.000000e+00 : f32
    %6 = vector.broadcast %cst_5 : f32 to vector<64x32xf32>
    %7 = arith.maximumf %5, %6 : vector<64x32xf32>
    %8 = arith.truncf %7 : vector<64x32xf32> to vector<64x32xbf16>
    %c16 = arith.constant 16 : index
    %c0_6 = arith.constant 0 : index
    %9 = vector.load %arg3[%c16, %c0_6] : memref<112x128xbf16, #tpu.memory_space<vmem>>, vector<32x32xbf16>
    %cst_7 = arith.constant dense<0.000000e+00> : vector<64x32xf32>
    %10 = tpu.matmul %8, %9, %cst_7 {dimension_numbers = #tpu.dot_dimension_numbers<[1], [0], [0], [1], [0, 0, 1, 1], [], []>} : vector<64x32xbf16>, vector<32x32xbf16>, vector<64x32xf32> -> vector<64x32xf32>
    %c1 = arith.constant 1 : index
    %c0_8 = arith.constant 0 : index
    %11 = vector.load %arg4[%c1, %c0_8] : memref<4x128xf32, #tpu.memory_space<vmem>>, vector<1x32xf32>
    %12 = vector.broadcast %11 : vector<1x32xf32> to vector<64x32xf32>
    %13 = arith.addf %10, %12 : vector<64x32xf32>
    %cst_9 = arith.constant 0.000000e+00 : f32
    %14 = vector.broadcast %cst_9 : f32 to vector<64x32xf32>
    %15 = arith.maximumf %13, %14 : vector<64x32xf32>
    %c0_10 = arith.constant 0 : index
    %c0_11 = arith.constant 0 : index
    %16 = vector.load %arg2[%c0_10, %c0_11] : memref<8x64xbf16, #tpu.memory_space<vmem>>, vector<8x64xbf16>
    %17 = arith.truncf %15 : vector<64x32xf32> to vector<64x32xbf16>
    %cst_12 = arith.constant dense<0.000000e+00> : vector<8x32xf32>
    %18 = tpu.matmul %16, %17, %cst_12 {dimension_numbers = #tpu.dot_dimension_numbers<[1], [0], [0], [1], [0, 0, 1, 1], [], []>} : vector<8x64xbf16>, vector<64x32xbf16>, vector<8x32xf32> -> vector<8x32xf32>
    %19 = arith.truncf %18 : vector<8x32xf32> to vector<8x32xbf16>
    %c48 = arith.constant 48 : index
    %c0_13 = arith.constant 0 : index
    %20 = vector.load %arg3[%c48, %c0_13] : memref<112x128xbf16, #tpu.memory_space<vmem>>, vector<32x32xbf16>
    %cst_14 = arith.constant dense<0.000000e+00> : vector<8x32xf32>
    %21 = tpu.matmul %19, %20, %cst_14 {dimension_numbers = #tpu.dot_dimension_numbers<[1], [0], [0], [1], [0, 0, 1, 1], [], []>} : vector<8x32xbf16>, vector<32x32xbf16>, vector<8x32xf32> -> vector<8x32xf32>
    %c2 = arith.constant 2 : index
    %c0_15 = arith.constant 0 : index
    %22 = vector.load %arg4[%c2, %c0_15] : memref<4x128xf32, #tpu.memory_space<vmem>>, vector<1x32xf32>
    %23 = vector.broadcast %22 : vector<1x32xf32> to vector<8x32xf32>
    %24 = arith.addf %21, %23 : vector<8x32xf32>
    %cst_16 = arith.constant 0.000000e+00 : f32
    %25 = vector.broadcast %cst_16 : f32 to vector<8x32xf32>
    %26 = arith.maximumf %24, %25 : vector<8x32xf32>
    %27 = arith.truncf %26 : vector<8x32xf32> to vector<8x32xbf16>
    %c80 = arith.constant 80 : index
    %c0_17 = arith.constant 0 : index
    %28 = vector.load %arg3[%c80, %c0_17] : memref<112x128xbf16, #tpu.memory_space<vmem>>, vector<32x128xbf16>
    %cst_18 = arith.constant dense<0.000000e+00> : vector<8x128xf32>
    %29 = tpu.matmul %27, %28, %cst_18 {dimension_numbers = #tpu.dot_dimension_numbers<[1], [0], [0], [1], [0, 0, 1, 1], [], []>} : vector<8x32xbf16>, vector<32x128xbf16>, vector<8x128xf32> -> vector<8x128xf32>
    %c3 = arith.constant 3 : index
    %c0_19 = arith.constant 0 : index
    %30 = vector.load %arg4[%c3, %c0_19] : memref<4x128xf32, #tpu.memory_space<vmem>>, vector<1x128xf32>
    %31 = vector.broadcast %30 : vector<1x128xf32> to vector<8x128xf32>
    %32 = arith.addf %29, %31 : vector<8x128xf32>
    %c0_20 = arith.constant 0 : index
    %c0_21 = arith.constant 0 : index
    %33 = vector.load %arg5[%c0_20, %c0_21] : memref<8x128xf32, #tpu.memory_space<vmem>>, vector<8x128xf32>
    tpu.vector_store %arg5[%c0_20, %c0_21], %32 {strides = array<i32>} : memref<8x128xf32, #tpu.memory_space<vmem>>, vector<8x128xf32>,
    return
  }
  func.func @transform_0(%arg0: i32) -> (i32, i32) {
    %c0_i32 = arith.constant 0 : i32
    %c0_i32_0 = arith.constant 0 : i32
    %c0_i32_1 = arith.constant 0 : i32
    return %c0_i32, %c0_i32_0 : i32, i32
  }
  func.func @transform_1(%arg0: i32) -> (i32, i32) {
    %c0_i32 = arith.constant 0 : i32
    %c0_i32_0 = arith.constant 0 : i32
    %c0_i32_1 = arith.constant 0 : i32
    return %c0_i32, %c0_i32_0 : i32, i32
  }
  func.func @transform_2(%arg0: i32) -> (i32, i32) {
    %c0_i32 = arith.constant 0 : i32
    %c0_i32_0 = arith.constant 0 : i32
    %c0_i32_1 = arith.constant 0 : i32
    return %c0_i32, %c0_i32_0 : i32, i32
  }
  func.func @transform_3(%arg0: i32) -> (i32, i32) {
    %c0_i32 = arith.constant 0 : i32
    %c0_i32_0 = arith.constant 0 : i32
    %c0_i32_1 = arith.constant 0 : i32
    return %c0_i32, %c0_i32_0 : i32, i32
  }
  func.func @transform_4(%arg0: i32) -> (i32, i32) {
    %c0_i32 = arith.constant 0 : i32
    %c0_i32_0 = arith.constant 0 : i32
    %c0_i32_1 = arith.constant 0 : i32
    return %c0_i32, %c0_i32_0 : i32, i32
  }
}

</mosaic_0001>

<llo_original>
// kernel: tpu_custom_call.1
$region0: #{tpu_custom_call.1}
  #allocation0 [shape = 'u32[]', space=smem, size = 0x4, offset = 0x4, fixed_abs, tag = 'smem constant byte address 0x4 - core index']
  #allocation1 [shape = 'u32[144,128]{1,0:T(1,128)}', space=vmem, size = 0x12000, scoped, tag = 'internal scratch']
  %s0 = inlined_call_operand.vmem [shape: bf16[64,16], index: 0, kind: input, shape index: {}]
  %s1 = inlined_call_operand.vmem [shape: bf16[8,64], index: 1, kind: input, shape index: {}]
  %s2 = inlined_call_operand.hbm [shape: bf16[112,128], index: 2, kind: input, shape index: {}]
  %s3 = inlined_call_operand.vmem [shape: f32[4,128], index: 3, kind: input, shape index: {}]
  %s4 = inlined_call_operand.hbm [shape: f32[8,128], index: 4, kind: output, shape index: {}]
  %s5 = sld [smem:[#allocation0]]
  $region30: #{tpu_custom_call.1} parent=0
    _
  %s7 = ssub.s32 1, %s5
  %s8 = scalar_select 0, %s7, %s5
  $region1: #{tpu_custom_call.1} parent=0
    #allocation2 [shape = 'u8[28672]{0}', space=vmem, size = 0x7000, scoped, tag = 'input window, operand 2, single buffered']
    #allocation3 [shape = 's32[1]{0}', space=sflag, size = 0x4, scoped, tag = 'scoped memory for tpu_custom_call.1']
    #allocation4 [shape = 's32[1]{0}', space=sflag, size = 0x4, scoped, tag = 'scoped memory for tpu_custom_call.1']
    #allocation5 [shape = 'u8[4096]{0}', space=vmem, size = 0x1000, scoped, tag = 'output window, operand 0, single buffered']
    %9 = vsyncpa [#allocation3], 0
    %10 = vsyncpa [#allocation4], 0
    // Predicated region
    $region2: #{tpu_custom_call.1} parent=1 // pred_check
      _
    $region3: #{tpu_custom_call.1} parent=1 // pred_check_branch
      %12 = sbr.rel (0) target = $region5
    $region4: #{tpu_custom_call.1} parent=1 // pred_region
      _
    $region5: #{tpu_custom_call.1} parent=1 // pred_fallthru
      _
    // Predicated region
    $region6: #{tpu_custom_call.1} parent=1 // pred_check
      _
    $region7: #{tpu_custom_call.1} parent=1 // pred_check_branch
      %14 = sbr.rel (0) target = $region9
    $region8: #{tpu_custom_call.1} parent=1 // pred_region
      _
    $region9: #{tpu_custom_call.1} parent=1 // pred_fallthru
      _
    // Predicated region
    $region10: #{tpu_custom_call.1} parent=1 // pred_check
      _
    $region11: #{tpu_custom_call.1} parent=1 // pred_check_branch
      %16 = sbr.rel (0) target = $region13
    $region12: #{tpu_custom_call.1} parent=1 // pred_region
      %s18 = ssub.s32 896, 896
      %19 = vsyncadd [#allocation3], %s18
      %s20 = sshll.u32 [#allocation2], 4
      %s21 = int_to_ptr.vmem [resolvable:$true] %s20
      %26 = dma.hbm_to_vmem [thread:$0]  %s2, 896, %s21, [#allocation3], 64, 64, 4
    $region13: #{tpu_custom_call.1} parent=1 // pred_fallthru
      _
    // Predicated region
    $region14: #{tpu_custom_call.1} parent=1 // pred_check
      _
    $region15: #{tpu_custom_call.1} parent=1 // pred_check_branch
      %28 = sbr.rel (0) target = $region17
    $region16: #{tpu_custom_call.1} parent=1 // pred_region
      _
    $region17: #{tpu_custom_call.1} parent=1 // pred_fallthru
      _
    // Predicated region
    $region18: #{tpu_custom_call.1} parent=1 // pred_check
      _
    $region19: #{tpu_custom_call.1} parent=1 // pred_check_branch
      %30 = sbr.rel (0) target = $region21
    $region20: #{tpu_custom_call.1} parent=1 // pred_region
      %31 = dma.done [#allocation3], 896
    $region21: #{tpu_custom_call.1} parent=1 // pred_fallthru
      _
    %v33 = vld [vmem:[%s0] sm:$0xf]
    %v34 = vld [vmem:[%s0 + $0x4] sm:$0xf]
    %v35 = vld [vmem:[%s0 + $0x8] sm:$0xf]
    %v36 = vld [vmem:[%s0 + $0xc] sm:$0xf]
    %v37 = vld [vmem:[%s0 + $0x10] sm:$0xf]
    %v38 = vld [vmem:[%s0 + $0x14] sm:$0xf]
    %v39 = vld [vmem:[%s0 + $0x18] sm:$0xf]
    %v40 = vld [vmem:[%s0 + $0x1c] sm:$0xf]
    %v41 = vld [vmem:[#allocation2] sm:$0xf]
    %v42 = vld [vmem:[#allocation2 + $0x4] sm:$0xf]
    %v43 = vld [vmem:[%s3] sm:$0x1]
    %v44 = vlaneseq
    %v45 = vshrl.u32 %v44, 7
    %v46 = vsub.s32 0, %v45
    %v47 = vrot.slane %v43, %v46
    %v56 = vunpack.c.l.b16 %v33
    %v57 = vunpack.c.l.b16 %v34
    %v58 = vunpack.c.l.b16 %v35
    %v59 = vunpack.c.l.b16 %v36
    %v60 = vunpack.c.l.b16 %v37
    %v61 = vunpack.c.l.b16 %v38
    %v62 = vunpack.c.l.b16 %v39
    %v63 = vunpack.c.l.b16 %v40
    %v64 = vpack.c.b16 %v57, %v56
    %v65 = vpack.c.b16 %v59, %v58
    %v66 = vpack.c.b16 %v61, %v60
    %v67 = vpack.c.b16 %v63, %v62
    %v70 = vunpack.c.l.b16 %v41
    %v71 = vunpack.c.l.b16 %v42
    %v72 = vpack.c.b16 %v71, %v70
    %vm74 = vcmask 130048
    %v76 = vsel %vm74, %v64, 0
    %v79 = vsel %vm74, %v65, 0
    %v82 = vsel %vm74, %v66, 0
    %v85 = vsel %vm74, %v67, 0
    %87 = vmatprep.subr.bf16.mxu0 0
    %88 = vmatpush1.bf16.msra.mxu0 %v72
    %89 = vmatprep.subr.bf16.mxu0 0
    %90 = vmatpush1.bf16.msra.mxu0 0
    %91 = vmatprep.subr.bf16.mxu0 0
    %92 = vmatpush1.bf16.msra.mxu0 0
    %93 = vmatprep.subr.bf16.mxu0 0
    %94 = vmatpush1.bf16.msra.mxu0 0
    %95 = vmatprep.subr.bf16.mxu0 0
    %96 = vmatpush1.bf16.msra.mxu0 0
    %97 = vmatprep.subr.bf16.mxu0 0
    %98 = vmatpush1.bf16.msra.mxu0 0
    %99 = vmatprep.subr.bf16.mxu0 0
    %100 = vmatpush1.bf16.msra.mxu0 0
    %101 = vmatprep.subr.bf16.mxu0 0
    %102 = vmatpush1.bf16.msra.mxu0 0
    %103 = vmatprep.subr.bf16.mxu0 0
    %104 = vmatpush1.bf16.msra.mxu0 0
    %105 = vmatprep.subr.bf16.mxu0 0
    %106 = vmatpush1.bf16.msra.mxu0 0
    %107 = vmatprep.subr.bf16.mxu0 0
    %108 = vmatpush1.bf16.msra.mxu0 0
    %109 = vmatprep.subr.bf16.mxu0 0
    %110 = vmatpush1.bf16.msra.mxu0 0
    %111 = vmatprep.subr.bf16.mxu0 0
    %112 = vmatpush1.bf16.msra.mxu0 0
    %113 = vmatprep.subr.bf16.mxu0 0
    %114 = vmatpush1.bf16.msra.mxu0 0
    %115 = vmatprep.subr.bf16.mxu0 0
    %116 = vmatpush1.bf16.msra.mxu0 0
    %117 = vmatprep.subr.bf16.mxu0 0
    %118 = vmatpush1.bf16.msra.mxu0 0
    %119 = vmatprep.mubr.bf16.mxu0 0
    %120 = vmatmul.mubr.bf16.gmra.mrb[0].mxu0 %v76
    %v121 = vpop.f32.mrb[0].mxu0
    %v122 = vadd.f32 %v47, %v121
    %v123 = vpop.f32.mrb[0].mxu0
    %v124 = vpop.f32.mrb[0].mxu0
    %v125 = vadd.f32 %v47, %v124
    %v126 = vpop.f32.mrb[0].mxu0
    %127 = vmatprep.mubr.bf16.mxu0 0
    %128 = vmatmul.mubr.bf16.gmra.mrb[0].mxu0 %v79
    %v129 = vpop.f32.mrb[0].mxu0
    %v130 = vadd.f32 %v47, %v129
    %v131 = vpop.f32.mrb[0].mxu0
    %v132 = vpop.f32.mrb[0].mxu0
    %v133 = vadd.f32 %v47, %v132
    %v134 = vpop.f32.mrb[0].mxu0
    %135 = vmatprep.mubr.bf16.mxu0 0
    %136 = vmatmul.mubr.bf16.gmra.mrb[0].mxu0 %v82
    %v137 = vpop.f32.mrb[0].mxu0
    %v138 = vadd.f32 %v47, %v137
    %v139 = vpop.f32.mrb[0].mxu0
    %v140 = vpop.f32.mrb[0].mxu0
    %v141 = vadd.f32 %v47, %v140
    %v142 = vpop.f32.mrb[0].mxu0
    %143 = vmatprep.mubr.bf16.mxu0 0
    %144 = vmatmul.mubr.bf16.gmra.mrb[0].mxu0 %v85
    %v145 = vpop.f32.mrb[0].mxu0
    %v146 = vadd.f32 %v47, %v145
    %v147 = vpop.f32.mrb[0].mxu0
    %v148 = vpop.f32.mrb[0].mxu0
    %v149 = vadd.f32 %v47, %v148
    %v150 = vpop.f32.mrb[0].mxu0
    %151 = vdwg.mxu0
    %v152 = vmax.f32 %v122, 0.0
    %v153 = vmax.f32 %v125, 0.0
    %v154 = vmax.f32 %v130, 0.0
    %v155 = vmax.f32 %v133, 0.0
    %v156 = vmax.f32 %v138, 0.0
    %v157 = vmax.f32 %v141, 0.0
    %v158 = vmax.f32 %v146, 0.0
    %v159 = vmax.f32 %v149, 0.0
    %v160 = vpack.c.bf16 %v153, %v152
    %v161 = vpack.c.bf16 %v155, %v154
    %v162 = vpack.c.bf16 %v157, %v156
    %v163 = vpack.c.bf16 %v159, %v158
    %v164 = vld [vmem:[#allocation2 + $0x8] sm:$0xf]
    %v165 = vld [vmem:[#allocation2 + $0xc] sm:$0xf]
    %v166 = vld [vmem:[#allocation2 + $0x10] sm:$0xf]
    %v167 = vld [vmem:[#allocation2 + $0x14] sm:$0xf]
    %v168 = vld [vmem:[%s3 + $0x1] sm:$0x1]
    %v169 = vlaneseq
    %v170 = vshrl.u32 %v169, 7
    %v171 = vsub.s32 0, %v170
    %v172 = vrot.slane %v168, %v171
    %v177 = vunpack.c.l.b16 %v164
    %v178 = vunpack.c.l.b16 %v165
    %v179 = vunpack.c.l.b16 %v166
    %v180 = vunpack.c.l.b16 %v167
    %v181 = vpack.c.b16 %v178, %v177
    %v182 = vpack.c.b16 %v180, %v179
    %vm185 = vcmask 261120
    %v187 = vsel %vm185, %v160, 0
    %v190 = vsel %vm185, %v161, 0
    %v193 = vsel %vm185, %v162, 0
    %v196 = vsel %vm185, %v163, 0
    %198 = vmatprep.subr.bf16.mxu0 0
    %199 = vmatpush1.bf16.msra.mxu0 %v181
    %200 = vmatprep.subr.bf16.mxu0 0
    %201 = vmatpush1.bf16.msra.mxu0 %v182
    %202 = vmatprep.subr.bf16.mxu0 0
    %203 = vmatpush1.bf16.msra.mxu0 0
    %204 = vmatprep.subr.bf16.mxu0 0
    %205 = vmatpush1.bf16.msra.mxu0 0
    %206 = vmatprep.subr.bf16.mxu0 0
    %207 = vmatpush1.bf16.msra.mxu0 0
    %208 = vmatprep.subr.bf16.mxu0 0
    %209 = vmatpush1.bf16.msra.mxu0 0
    %210 = vmatprep.subr.bf16.mxu0 0
    %211 = vmatpush1.bf16.msra.mxu0 0
    %212 = vmatprep.subr.bf16.mxu0 0
    %213 = vmatpush1.bf16.msra.mxu0 0
    %214 = vmatprep.subr.bf16.mxu0 0
    %215 = vmatpush1.bf16.msra.mxu0 0
    %216 = vmatprep.subr.bf16.mxu0 0
    %217 = vmatpush1.bf16.msra.mxu0 0
    %218 = vmatprep.subr.bf16.mxu0 0
    %219 = vmatpush1.bf16.msra.mxu0 0
    %220 = vmatprep.subr.bf16.mxu0 0
    %221 = vmatpush1.bf16.msra.mxu0 0
    %222 = vmatprep.subr.bf16.mxu0 0
    %223 = vmatpush1.bf16.msra.mxu0 0
    %224 = vmatprep.subr.bf16.mxu0 0
    %225 = vmatpush1.bf16.msra.mxu0 0
    %226 = vmatprep.subr.bf16.mxu0 0
    %227 = vmatpush1.bf16.msra.mxu0 0
    %228 = vmatprep.subr.bf16.mxu0 0
    %229 = vmatpush1.bf16.msra.mxu0 0
    %230 = vmatprep.mubr.bf16.mxu0 0
    %231 = vmatmul.mubr.bf16.gmra.mrb[0].mxu0 %v187
    %v232 = vpop.f32.mrb[0].mxu0
    %v233 = vadd.f32 %v172, %v232
    %v234 = vpop.f32.mrb[0].mxu0
    %v235 = vpop.f32.mrb[0].mxu0
    %v236 = vadd.f32 %v172, %v235
    %v237 = vpop.f32.mrb[0].mxu0
    %238 = vmatprep.mubr.bf16.mxu0 0
    %239 = vmatmul.mubr.bf16.gmra.mrb[0].mxu0 %v190
    %v240 = vpop.f32.mrb[0].mxu0
    %v241 = vadd.f32 %v172, %v240
    %v242 = vpop.f32.mrb[0].mxu0
    %v243 = vpop.f32.mrb[0].mxu0
    %v244 = vadd.f32 %v172, %v243
    %v245 = vpop.f32.mrb[0].mxu0
    %246 = vmatprep.mubr.bf16.mxu0 0
    %247 = vmatmul.mubr.bf16.gmra.mrb[0].mxu0 %v193
    %v248 = vpop.f32.mrb[0].mxu0
    %v249 = vadd.f32 %v172, %v248
    %v250 = vpop.f32.mrb[0].mxu0
    %v251 = vpop.f32.mrb[0].mxu0
    %v252 = vadd.f32 %v172, %v251
    %v253 = vpop.f32.mrb[0].mxu0
    %254 = vmatprep.mubr.bf16.mxu0 0
    %255 = vmatmul.mubr.bf16.gmra.mrb[0].mxu0 %v196
    %v256 = vpop.f32.mrb[0].mxu0
    %v257 = vadd.f32 %v172, %v256
    %v258 = vpop.f32.mrb[0].mxu0
    %v259 = vpop.f32.mrb[0].mxu0
    %v260 = vadd.f32 %v172, %v259
    %v261 = vpop.f32.mrb[0].mxu0
    %262 = vdwg.mxu0
    %v263 = vmax.f32 %v233, 0.0
    %v264 = vmax.f32 %v236, 0.0
    %v265 = vmax.f32 %v241, 0.0
    %v266 = vmax.f32 %v244, 0.0
    %v267 = vmax.f32 %v249, 0.0
    %v268 = vmax.f32 %v252, 0.0
    %v269 = vmax.f32 %v257, 0.0
    %v270 = vmax.f32 %v260, 0.0
    %v271 = vld [vmem:[%s1] sm:$0xf]
    %v272 = vpack.c.bf16 %v264, %v263
    %v273 = vpack.c.bf16 %v266, %v265
    %v274 = vpack.c.bf16 %v268, %v267
    %v275 = vpack.c.bf16 %v270, %v269
    %vm276 = vcmask 523264
    %v278 = vsel %vm276, %v271, 0
    %280 = vmatprep.subr.bf16.mxu0 0
    %281 = vmatpush1.bf16.msra.mxu0 %v272
    %282 = vmatprep.subr.bf16.mxu0 0
    %283 = vmatpush1.bf16.msra.mxu0 %v273
    %284 = vmatprep.subr.bf16.mxu0 0
    %285 = vmatpush1.bf16.msra.mxu0 %v274
    %286 = vmatprep.subr.bf16.mxu0 0
    %287 = vmatpush1.bf16.msra.mxu0 %v275
    %288 = vmatprep.subr.bf16.mxu0 0
    %289 = vmatpush1.bf16.msra.mxu0 0
    %290 = vmatprep.subr.bf16.mxu0 0
    %291 = vmatpush1.bf16.msra.mxu0 0
    %292 = vmatprep.subr.bf16.mxu0 0
    %293 = vmatpush1.bf16.msra.mxu0 0
    %294 = vmatprep.subr.bf16.mxu0 0
    %295 = vmatpush1.bf16.msra.mxu0 0
    %296 = vmatprep.subr.bf16.mxu0 0
    %297 = vmatpush1.bf16.msra.mxu0 0
    %298 = vmatprep.subr.bf16.mxu0 0
    %299 = vmatpush1.bf16.msra.mxu0 0
    %300 = vmatprep.subr.bf16.mxu0 0
    %301 = vmatpush1.bf16.msra.mxu0 0
    %302 = vmatprep.subr.bf16.mxu0 0
    %303 = vmatpush1.bf16.msra.mxu0 0
    %304 = vmatprep.subr.bf16.mxu0 0
    %305 = vmatpush1.bf16.msra.mxu0 0
    %306 = vmatprep.subr.bf16.mxu0 0
    %307 = vmatpush1.bf16.msra.mxu0 0
    %308 = vmatprep.subr.bf16.mxu0 0
    %309 = vmatpush1.bf16.msra.mxu0 0
    %310 = vmatprep.subr.bf16.mxu0 0
    %311 = vmatpush1.bf16.msra.mxu0 0
    %312 = vmatprep.mubr.bf16.mxu0 0
    %313 = vmatmul.mubr.bf16.gmra.mrb[0].mxu0 %v278
    %v314 = vpop.f32.mrb[0].mxu0
    %v315 = vadd.f32 0.0, %v314
    %v316 = vpop.f32.mrb[0].mxu0
    %v317 = vpop.f32.mrb[0].mxu0
    %v318 = vpop.f32.mrb[0].mxu0
    %319 = vdwg.mxu0
    %v320 = vpack.c.bf16 %v315, %v315
    %v321 = vld [vmem:[#allocation2 + $0x18] sm:$0xf]
    %v322 = vld [vmem:[#allocation2 + $0x1c] sm:$0xf]
    %v323 = vld [vmem:[#allocation2 + $0x20] sm:$0xf]
    %v324 = vld [vmem:[#allocation2 + $0x24] sm:$0xf]
    %v325 = vld [vmem:[%s3 + $0x2] sm:$0x1]
    %v326 = vlaneseq
    %v327 = vshrl.u32 %v326, 7
    %v328 = vsub.s32 0, %v327
    %v329 = vrot.slane %v325, %v328
    %v334 = vunpack.c.l.b16 %v321
    %v335 = vunpack.c.l.b16 %v322
    %v336 = vunpack.c.l.b16 %v323
    %v337 = vunpack.c.l.b16 %v324
    %v338 = vpack.c.b16 %v335, %v334
    %v339 = vpack.c.b16 %v337, %v336
    %v343 = vsel %vm185, %v320, 0
    %345 = vmatprep.subr.bf16.mxu0 0
    %346 = vmatpush1.bf16.msra.mxu0 %v338
    %347 = vmatprep.subr.bf16.mxu0 0
    %348 = vmatpush1.bf16.msra.mxu0 %v339
    %349 = vmatprep.subr.bf16.mxu0 0
    %350 = vmatpush1.bf16.msra.mxu0 0
    %351 = vmatprep.subr.bf16.mxu0 0
    %352 = vmatpush1.bf16.msra.mxu0 0
    %353 = vmatprep.subr.bf16.mxu0 0
    %354 = vmatpush1.bf16.msra.mxu0 0
    %355 = vmatprep.subr.bf16.mxu0 0
    %356 = vmatpush1.bf16.msra.mxu0 0
    %357 = vmatprep.subr.bf16.mxu0 0
    %358 = vmatpush1.bf16.msra.mxu0 0
    %359 = vmatprep.subr.bf16.mxu0 0
    %360 = vmatpush1.bf16.msra.mxu0 0
    %361 = vmatprep.subr.bf16.mxu0 0
    %362 = vmatpush1.bf16.msra.mxu0 0
    %363 = vmatprep.subr.bf16.mxu0 0
    %364 = vmatpush1.bf16.msra.mxu0 0
    %365 = vmatprep.subr.bf16.mxu0 0
    %366 = vmatpush1.bf16.msra.mxu0 0
    %367 = vmatprep.subr.bf16.mxu0 0
    %368 = vmatpush1.bf16.msra.mxu0 0
    %369 = vmatprep.subr.bf16.mxu0 0
    %370 = vmatpush1.bf16.msra.mxu0 0
    %371 = vmatprep.subr.bf16.mxu0 0
    %372 = vmatpush1.bf16.msra.mxu0 0
    %373 = vmatprep.subr.bf16.mxu0 0
    %374 = vmatpush1.bf16.msra.mxu0 0
    %375 = vmatprep.subr.bf16.mxu0 0
    %376 = vmatpush1.bf16.msra.mxu0 0
    %377 = vmatprep.mubr.bf16.mxu0 0
    %378 = vmatmul.mubr.bf16.gmra.mrb[0].mxu0 %v343
    %v379 = vpop.f32.mrb[0].mxu0
    %v380 = vadd.f32 %v329, %v379
    %v381 = vpop.f32.mrb[0].mxu0
    %v382 = vpop.f32.mrb[0].mxu0
    %v383 = vpop.f32.mrb[0].mxu0
    %384 = vdwg.mxu0
    %v385 = vmax.f32 %v380, 0.0
    %v386 = vpack.c.bf16 %v385, %v385
    %v387 = vld [vmem:[#allocation2 + $0x28] sm:$0xf]
    %v388 = vld [vmem:[#allocation2 + $0x2c] sm:$0xf]
    %v389 = vld [vmem:[#allocation2 + $0x30] sm:$0xf]
    %v390 = vld [vmem:[#allocation2 + $0x34] sm:$0xf]
    %v391 = vld [vmem:[%s3 + $0x3] sm:$0x1]
    %v392 = vlaneseq
    %v393 = vshrl.u32 %v392, 7
    %v394 = vsub.s32 0, %v393
    %v395 = vrot.slane %v391, %v394
    %v400 = vunpack.c.l.b16 %v387
    %v401 = vunpack.c.l.b16 %v388
    %v402 = vunpack.c.l.b16 %v389
    %v403 = vunpack.c.l.b16 %v390
    %v404 = vpack.c.b16 %v401, %v400
    %v405 = vpack.c.b16 %v403, %v402
    %v409 = vsel %vm185, %v386, 0
    %411 = vmatprep.subr.bf16.mxu0 0
    %412 = vmatpush1.bf16.msra.mxu0 %v404
    %413 = vmatprep.subr.bf16.mxu0 0
    %414 = vmatpush1.bf16.msra.mxu0 %v405
    %415 = vmatprep.subr.bf16.mxu0 0
    %416 = vmatpush1.bf16.msra.mxu0 0
    %417 = vmatprep.subr.bf16.mxu0 0
    %418 = vmatpush1.bf16.msra.mxu0 0
    %419 = vmatprep.subr.bf16.mxu0 0
    %420 = vmatpush1.bf16.msra.mxu0 0
    %421 = vmatprep.subr.bf16.mxu0 0
    %422 = vmatpush1.bf16.msra.mxu0 0
    %423 = vmatprep.subr.bf16.mxu0 0
    %424 = vmatpush1.bf16.msra.mxu0 0
    %425 = vmatprep.subr.bf16.mxu0 0
    %426 = vmatpush1.bf16.msra.mxu0 0
    %427 = vmatprep.subr.bf16.mxu0 0
    %428 = vmatpush1.bf16.msra.mxu0 0
    %429 = vmatprep.subr.bf16.mxu0 0
    %430 = vmatpush1.bf16.msra.mxu0 0
    %431 = vmatprep.subr.bf16.mxu0 0
    %432 = vmatpush1.bf16.msra.mxu0 0
    %433 = vmatprep.subr.bf16.mxu0 0
    %434 = vmatpush1.bf16.msra.mxu0 0
    %435 = vmatprep.subr.bf16.mxu0 0
    %436 = vmatpush1.bf16.msra.mxu0 0
    %437 = vmatprep.subr.bf16.mxu0 0
    %438 = vmatpush1.bf16.msra.mxu0 0
    %439 = vmatprep.subr.bf16.mxu0 0
    %440 = vmatpush1.bf16.msra.mxu0 0
    %441 = vmatprep.subr.bf16.mxu0 0
    %442 = vmatpush1.bf16.msra.mxu0 0
    %443 = vmatprep.mubr.bf16.mxu0 0
    %444 = vmatmul.mubr.bf16.gmra.mrb[0].mxu0 %v409
    %v445 = vpop.f32.mrb[0].mxu0
    %v446 = vadd.f32 %v395, %v445
    %v447 = vpop.f32.mrb[0].mxu0
    %v448 = vpop.f32.mrb[0].mxu0
    %v449 = vpop.f32.mrb[0].mxu0
    %450 = vdwg.mxu0
    %451 = vst [vmem:[#allocation5] sm:$0xff] %v446
    // Predicated region
    $region22: #{tpu_custom_call.1} parent=1 // pred_check
      _
    $region23: #{tpu_custom_call.1} parent=1 // pred_check_branch
      %453 = sbr.rel (0) target = $region25
    $region24: #{tpu_custom_call.1} parent=1 // pred_region
      %s455 = ssub.s32 128, 128
      %456 = vsyncadd [#allocation4], %s455
      %s458 = sshll.u32 [#allocation5], 4
      %s459 = int_to_ptr.vmem [resolvable:$true] %s458
      %461 = dma.vmem_to_hbm [thread:$0]  %s459, 128, %s4, [#allocation4]
    $region25: #{tpu_custom_call.1} parent=1 // pred_fallthru
      _
    // Predicated region
    $region26: #{tpu_custom_call.1} parent=1 // pred_check
      _
    $region27: #{tpu_custom_call.1} parent=1 // pred_check_branch
      %463 = sbr.rel (0) target = $region29
    $region28: #{tpu_custom_call.1} parent=1 // pred_region
      %464 = dma.done [#allocation4], 128
    $region29: #{tpu_custom_call.1} parent=1 // pred_fallthru
      _
    %465 = vsyncpa [#allocation3], 1
    %466 = vsyncpa [#allocation4], 1

</llo_original>
